<compile_context>
chip_gen: v7x
topology: tpu7x:2x2x1
jax: 0.10.0
libtpu: 0.0.40
codegen_flags: <defaults>
</compile_context>

<pallas_src>
import jax
import jax.numpy as jnp
from jax.experimental import pallas as pl
from jax.experimental.pallas import tpu as pltpu

_BLOCK_TARGET_BYTES = 1 << 20     # ~1 MiB of x per block: at/above streaming knee
_VMEM_LIMIT_FLOOR = 12 << 20
_VMEM_LIMIT_CAP = 32 << 20        # safe on v5e/v6e (128 MiB) and v7x (64 MiB/TC)


# ----------------------------------------------------------------------------
# Trace-time tile pickers (pure Python on static shapes).
# ----------------------------------------------------------------------------
def _row_block(rows, cap=256):
    """Largest multiple-of-8 divisor of `rows` <= cap that still yields >= 2
    row blocks (so both v7x TCs get work); falls back to a single full block."""
    if rows % 8 != 0:
        return rows
    best_multi, best_any = 0, 0
    r = 8
    while r <= min(cap, rows):
        if rows % r == 0:
            best_any = r
            if rows // r >= 2:
                best_multi = r
        r += 8
    if best_multi:
        return best_multi
    return best_any if best_any else rows


def _lane_tile(lanes, r_blk, elem_bytes, target_bytes=_BLOCK_TARGET_BYTES):
    """Largest multiple of 128 dividing `lanes` such that one (r_blk, tile)
    block of x stays near the ~1 MiB streaming target."""
    if lanes % 128 != 0:
        # TODO(synk): masked/Element tail path for ragged lane counts; for now
        # a single full-width block with an explicit size guard.
        assert r_blk * lanes * elem_bytes <= (12 << 20), (
            "ragged (non-128-multiple) lane count too large for a single block")
        return lanes
    max_tl = max(128, (target_bytes // (r_blk * elem_bytes)) // 128 * 128)
    max_tl = min(max_tl, lanes, 8192)
    best, t = 128, 256
    while t <= max_tl:
        if lanes % t == 0:
            best = t
        t += 128
    return best


def _fold_k(n, c):
    """Smallest k dividing n such that k*c is a multiple of 128 (lane-dense
    2-D layout); 1 if c is already aligned or no such k exists."""
    if c % 128 == 0 or n <= 1:
        return 1
    for k in range(1, n + 1):
        if n % k == 0 and (k * c) % 128 == 0 and k * c <= (1 << 15):
            return k
    return 1


def _vmem_params(semantics, block_list):
    """CompilerParams with vmem_limit_bytes sized to the (double-buffered,
    (8,128)-padded) working set plus headroom."""
    total = 0
    for shape, itemsize in block_list:
        r = -(-shape[-2] // 8) * 8
        l = -(-shape[-1] // 128) * 128
        total += 2 * r * l * itemsize
    limit = int(min(_VMEM_LIMIT_CAP, max(_VMEM_LIMIT_FLOOR, total + (4 << 20))))
    return pltpu.CompilerParams(dimension_semantics=semantics,
                                vmem_limit_bytes=limit)


# ----------------------------------------------------------------------------
# Kernels.
# ----------------------------------------------------------------------------
def _fused_row_reduce_kernel(x_ref, shift_ref, sd_ref, sq_ref):
    """Single-pass per-row shifted sum / sum-of-squares over the lane axis.

    Outputs are (r_blk, 128) lane-partial sums (lane p holds the sum over
    columns == p mod 128); accumulation is pure VPU adds on static 128-lane
    slices. The tiny final cross-lane reduce happens in the wrapper.
    """
    @pl.when(pl.program_id(1) == 0)
    def _():
        sd_ref[...] = jnp.zeros_like(sd_ref)
        sq_ref[...] = jnp.zeros_like(sq_ref)

    r_blk, tl = x_ref.shape
    if tl % 128 == 0:
        shift_b = jnp.broadcast_to(shift_ref[...], (r_blk, 128))  # hoisted bcast
        sd = sd_ref[...]
        sq = sq_ref[...]
        for p in range(tl // 128):                        # static unroll
            d = x_ref[:, p * 128:(p + 1) * 128].astype(jnp.float32) - shift_b
            sd = sd + d
            sq = sq + d * d
        sd_ref[...] = sd
        sq_ref[...] = sq
    else:
        # Ragged lane-count fallback: full-width tile, single cross-lane reduce.
        d = x_ref[...].astype(jnp.float32) - shift_ref[...]
        sd_ref[:, 0:1] += jnp.sum(d, axis=1, keepdims=True)
        sq_ref[:, 0:1] += jnp.sum(d * d, axis=1, keepdims=True)


def _fused_col_reduce_kernel(x_ref, shift_ref, sd_ref, sq_ref):
    """Single-pass per-column shifted sum / sum-of-squares over the row axis
    (2-D folded path). The axis-0 reduce is mostly vreg-wise VPU adds."""
    @pl.when(pl.program_id(1) == 0)
    def _():
        sd_ref[...] = jnp.zeros_like(sd_ref)
        sq_ref[...] = jnp.zeros_like(sq_ref)

    d = x_ref[...].astype(jnp.float32) - shift_ref[...]
    sd_ref[...] += jnp.sum(d, axis=0, keepdims=True)
    sq_ref[...] += jnp.sum(d * d, axis=0, keepdims=True)


def _affine_row_kernel(x_ref, ls_ref, o_ref):
    """y = scale * (x + loc) with per-row loc/scale stacked in one (r_blk,2)
    f32 side input; f32 math, cast only on the store."""
    ls = ls_ref[...]
    loc = ls[:, 0:1]
    scale = ls[:, 1:2]
    o_ref[...] = (scale * (x_ref[...].astype(jnp.float32) + loc)).astype(o_ref.dtype)


def _affine_col_kernel(x_ref, ls_ref, o_ref):
    """y = scale * (x + loc) with per-column loc/scale stacked in one
    (2, c_tl) f32 side input (2-D folded path)."""
    ls = ls_ref[...]
    loc = ls[0:1, :]
    scale = ls[1:2, :]
    o_ref[...] = (scale * (x_ref[...].astype(jnp.float32) + loc)).astype(o_ref.dtype)


# ----------------------------------------------------------------------------
# pallas_call wrappers.
# ----------------------------------------------------------------------------
def _fused_reduce_rows(x2, shift_rows):
    """(rows, lanes) -> two (rows, 128) lane-partial sums (shifted sum, sum^2)."""
    rows, lanes = x2.shape
    itemsize = int(jnp.dtype(x2.dtype).itemsize)
    r_blk = _row_block(rows)
    tl = _lane_tile(lanes, r_blk, itemsize)
    out = jax.ShapeDtypeStruct((rows, 128), jnp.float32)
    blocks = [((r_blk, tl), itemsize), ((r_blk, 1), 4),
              ((r_blk, 128), 4), ((r_blk, 128), 4)]
    return pl.pallas_call(
        _fused_row_reduce_kernel,
        out_shape=(out, out),
        grid_spec=pltpu.PrefetchScalarGridSpec(
            num_scalar_prefetch=0,
            grid=(rows // r_blk, lanes // tl),            # reduction axis last
            in_specs=[pl.BlockSpec((r_blk, tl), lambda i, j: (i, j)),
                      pl.BlockSpec((r_blk, 1), lambda i, j: (i, 0))],
            out_specs=[pl.BlockSpec((r_blk, 128), lambda i, j: (i, 0)),
                       pl.BlockSpec((r_blk, 128), lambda i, j: (i, 0))],
        ),
        compiler_params=_vmem_params(("parallel", "arbitrary"), blocks),
        cost_estimate=pl.CostEstimate(
            flops=4 * rows * lanes, transcendentals=0,
            bytes_accessed=rows * lanes * itemsize + rows * (2 * 128 * 4 + 4)),
    )(x2, shift_rows)


def _fused_reduce_cols(x2, shift_cols):
    """(rows, cols) -> two (1, cols) column sums (shifted sum, sum^2)."""
    rows, cols = x2.shape
    itemsize = int(jnp.dtype(x2.dtype).itemsize)
    r_blk = _row_block(rows)
    c_tl = _lane_tile(cols, r_blk, itemsize)
    out = jax.ShapeDtypeStruct((1, cols), jnp.float32)
    blocks = [((r_blk, c_tl), itemsize), ((1, c_tl), 4),
              ((1, c_tl), 4), ((1, c_tl), 4)]
    return pl.pallas_call(
        _fused_col_reduce_kernel,
        out_shape=(out, out),
        grid_spec=pltpu.PrefetchScalarGridSpec(
            num_scalar_prefetch=0,
            grid=(cols // c_tl, rows // r_blk),           # reduction (rows) last
            in_specs=[pl.BlockSpec((r_blk, c_tl), lambda j, i: (i, j)),
                      pl.BlockSpec((1, c_tl), lambda j, i: (0, j))],
            out_specs=[pl.BlockSpec((1, c_tl), lambda j, i: (0, j)),
                       pl.BlockSpec((1, c_tl), lambda j, i: (0, j))],
        ),
        compiler_params=_vmem_params(("parallel", "arbitrary"), blocks),
        cost_estimate=pl.CostEstimate(
            flops=4 * rows * cols, transcendentals=0,
            bytes_accessed=rows * cols * itemsize + 12 * cols),
    )(x2, shift_cols)


def _affine_rows(x2, ls_rows):
    """(rows, lanes) affine with stacked per-row (rows, 2) f32 [loc, scale]."""
    rows, lanes = x2.shape
    itemsize = int(jnp.dtype(x2.dtype).itemsize)
    r_blk = _row_block(rows)
    tl = _lane_tile(lanes, r_blk, itemsize)
    blocks = [((r_blk, tl), itemsize), ((r_blk, 2), 4), ((r_blk, tl), itemsize)]
    return pl.pallas_call(
        _affine_row_kernel,
        out_shape=jax.ShapeDtypeStruct((rows, lanes), x2.dtype),
        grid_spec=pltpu.PrefetchScalarGridSpec(
            num_scalar_prefetch=0,
            grid=(rows // r_blk, lanes // tl),
            in_specs=[pl.BlockSpec((r_blk, tl), lambda i, j: (i, j)),
                      pl.BlockSpec((r_blk, 2), lambda i, j: (i, 0))],
            out_specs=pl.BlockSpec((r_blk, tl), lambda i, j: (i, j)),
        ),
        compiler_params=_vmem_params(("parallel", "parallel"), blocks),
        cost_estimate=pl.CostEstimate(
            flops=2 * rows * lanes, transcendentals=0,
            bytes_accessed=2 * rows * lanes * itemsize),
    )(x2, ls_rows)


def _affine_cols(x2, ls_cols):
    """(rows, cols) affine with stacked per-column (2, cols) f32 [loc; scale]."""
    rows, cols = x2.shape
    itemsize = int(jnp.dtype(x2.dtype).itemsize)
    r_blk = _row_block(rows)
    c_tl = _lane_tile(cols, r_blk, itemsize)
    blocks = [((r_blk, c_tl), itemsize), ((2, c_tl), 4), ((r_blk, c_tl), itemsize)]
    return pl.pallas_call(
        _affine_col_kernel,
        out_shape=jax.ShapeDtypeStruct((rows, cols), x2.dtype),
        grid_spec=pltpu.PrefetchScalarGridSpec(
            num_scalar_prefetch=0,
            grid=(rows // r_blk, cols // c_tl),
            in_specs=[pl.BlockSpec((r_blk, c_tl), lambda i, j: (i, j)),
                      pl.BlockSpec((2, c_tl), lambda i, j: (0, j))],
            out_specs=pl.BlockSpec((r_blk, c_tl), lambda i, j: (i, j)),
        ),
        compiler_params=_vmem_params(("parallel", "parallel"), blocks),
        cost_estimate=pl.CostEstimate(
            flops=2 * rows * cols, transcendentals=0,
            bytes_accessed=2 * rows * cols * itemsize),
    )(x2, ls_cols)


# ----------------------------------------------------------------------------
# Module-level API mirroring PureActNorm.
# ----------------------------------------------------------------------------
@jax.jit
def pure_actnorm_initialize(x):
    """Data-dependent init: loc = -mean_c(x), scale = 1/(std_c(x, ddof=1)+1e-4).

    Single fused streaming pass over x (shifted sums / sums-of-squares with one
    representative data value per channel as the shift), tiny exact combine in
    the wrapper. Returns (loc, scale) as (C,) f32 vectors.
    """
    if x.ndim == 4:
        n, c, h, w = x.shape
        rows, lanes, cnt = n * c, h * w, n * h * w
        x2 = x.reshape(rows, lanes)                       # free reshape, no copy
        shift_c = x[0, :, 0, 0].astype(jnp.float32)       # one sample / channel
        shift_rows = jnp.tile(shift_c, n).reshape(rows, 1)  # row r -> channel r%C
        sd128, sq128 = _fused_reduce_rows(x2, shift_rows)
        sd_c = jnp.sum(sd128, axis=1).reshape(n, c).sum(axis=0)   # (C,)
        sq_c = jnp.sum(sq128, axis=1).reshape(n, c).sum(axis=0)   # (C,)
    elif x.ndim == 2:
        n, c = x.shape
        cnt = n
        k = _fold_k(n, c)                                 # lane-dense folding
        x2 = x.reshape(n // k, k * c)                     # free reshape
        shift_c = x[0, :].astype(jnp.float32)             # (C,)
        shift_cols = jnp.tile(shift_c, k).reshape(1, k * c)
        sd_f, sq_f = _fused_reduce_cols(x2, shift_cols)
        sd_c = sd_f.reshape(k, c).sum(axis=0)
        sq_c = sq_f.reshape(k, c).sum(axis=0)
    else:
        raise ValueError("expected 2D (N,C) or 4D (N,C,H,W) input")

    inv_cnt = jnp.float32(1.0 / cnt)
    mean = shift_c + sd_c * inv_cnt
    css = sq_c - sd_c * sd_c * inv_cnt                    # sum of sq. deviations
    # torch std(ddof=1) is NaN for cnt==1; we clamp (documented divergence).
    var = jnp.maximum(css, 0.0) / jnp.float32(max(cnt - 1, 1))
    std = jnp.sqrt(var)
    loc = -mean
    scale = 1.0 / (std + 1e-4)
    return loc, scale


@jax.jit
def pure_actnorm_forward(x, loc, scale):
    """y = scale * (x + loc), per-channel broadcast; loc/scale are (C,) f32."""
    loc = loc.astype(jnp.float32)
    scale = scale.astype(jnp.float32)
    if x.ndim == 4:
        n, c, h, w = x.shape
        x2 = x.reshape(n * c, h * w)
        ls = jnp.stack([jnp.tile(loc, n), jnp.tile(scale, n)], axis=1)  # (N*C,2)
        return _affine_rows(x2, ls).reshape(n, c, h, w)
    elif x.ndim == 2:
        n, c = x.shape
        k = _fold_k(n, c)
        x2 = x.reshape(n // k, k * c)
        ls = jnp.stack([jnp.tile(loc, k), jnp.tile(scale, k)], axis=0)  # (2,k*C)
        return _affine_cols(x2, ls).reshape(n, c)
    raise ValueError("expected 2D (N,C) or 4D (N,C,H,W) input")


# TODO(synk): the nn.Module's `initialized` / `initialize_this_forward` flags
# and the init-time print are host-side Python state, not kernel work.


if __name__ == "__main__":
    key = jax.random.PRNGKey(0)

    # ---- 4-D NCHW path ------------------------------------------------------
    N, C, H, W = 2, 4, 16, 16
    x = jax.random.normal(key, (N, C, H, W), dtype=jnp.float32) * 1.7 + 0.3

    loc, scale = pure_actnorm_initialize(x)
    y = jax.block_until_ready(pure_actnorm_forward(x, loc, scale))

    flat = jnp.transpose(x, (1, 0, 2, 3)).reshape(C, -1)
    mean_ref = flat.mean(axis=1)
    std_ref = flat.std(axis=1, ddof=1)
    loc_ref = -mean_ref
    scale_ref = 1.0 / (std_ref + 1e-4)
    y_ref = scale_ref[None, :, None, None] * (x + loc_ref[None, :, None, None])

    assert jnp.allclose(loc, loc_ref, atol=1e-4, rtol=1e-4)
    assert jnp.allclose(scale, scale_ref, atol=1e-4, rtol=1e-4)
    assert jnp.allclose(y, y_ref, atol=1e-4, rtol=1e-4)

    # ---- 2-D (N, C) path ----------------------------------------------------
    key2 = jax.random.PRNGKey(1)
    N2, C2 = 8, 32
    x2d = jax.random.normal(key2, (N2, C2), dtype=jnp.float32) * 0.9 - 1.2

    loc2, scale2 = pure_actnorm_initialize(x2d)
    y2d = jax.block_until_ready(pure_actnorm_forward(x2d, loc2, scale2))

    mean2 = x2d.mean(axis=0)
    std2 = x2d.std(axis=0, ddof=1)
    loc2_ref = -mean2
    scale2_ref = 1.0 / (std2 + 1e-4)
    y2d_ref = scale2_ref[None, :] * (x2d + loc2_ref[None, :])

    assert jnp.allclose(loc2, loc2_ref, atol=1e-4, rtol=1e-4)
    assert jnp.allclose(scale2, scale2_ref, atol=1e-4, rtol=1e-4)
    assert jnp.allclose(y2d, y2d_ref, atol=1e-4, rtol=1e-4)

    print("KERNEL_OK")
</pallas_src>

<mosaic_0001>
module attributes {stable_mosaic.version = 11 : i64} {
  func.func @_fused_row_reduce_kernel(%arg0: i32, %arg1: i32, %arg2: memref<8x256xf32, #tpu.memory_space<vmem>>, %arg3: memref<8x1xf32, #tpu.memory_space<vmem>>, %arg4: memref<8x128xf32, #tpu.memory_space<vmem>>, %arg5: memref<8x128xf32, #tpu.memory_space<vmem>>) attributes {dimension_semantics = [#tpu.dimension_semantics<parallel>, #tpu.dimension_semantics<arbitrary>], iteration_bounds = array<i64: 1, 1>, scalar_prefetch = 0 : i64, scratch_operands = 0 : i64, tpu.core_type = #tpu.core_type<tc>, window_params = [{transform_indices = @transform_0, window_bounds = array<i64: 8, 256>}, {transform_indices = @transform_1, window_bounds = array<i64: 8, 1>}, {transform_indices = @transform_2, window_bounds = array<i64: 8, 128>}, {transform_indices = @transform_3, window_bounds = array<i64: 8, 128>}]} {
    %c0_i32 = arith.constant 0 : i32
    %0 = arith.cmpi eq, %arg1, %c0_i32 : i32
    %1 = arith.extui %0 : i1 to i32
    %c0_i32_0 = arith.constant 0 : i32
    %2 = arith.cmpi ne, %1, %c0_i32_0 : i32
    scf.if %2 {
      %cst = arith.constant 0.000000e+00 : f32
      %20 = vector.broadcast %cst : f32 to vector<8x128xf32>
      %c0_13 = arith.constant 0 : index
      %c0_14 = arith.constant 0 : index
      %21 = vector.load %arg4[%c0_13, %c0_14] : memref<8x128xf32, #tpu.memory_space<vmem>>, vector<8x128xf32>
      tpu.vector_store %arg4[%c0_13, %c0_14], %20 {strides = array<i32>} : memref<8x128xf32, #tpu.memory_space<vmem>>, vector<8x128xf32>,
      %cst_15 = arith.constant 0.000000e+00 : f32
      %22 = vector.broadcast %cst_15 : f32 to vector<8x128xf32>
      %c0_16 = arith.constant 0 : index
      %c0_17 = arith.constant 0 : index
      %23 = vector.load %arg5[%c0_16, %c0_17] : memref<8x128xf32, #tpu.memory_space<vmem>>, vector<8x128xf32>
      tpu.vector_store %arg5[%c0_16, %c0_17], %22 {strides = array<i32>} : memref<8x128xf32, #tpu.memory_space<vmem>>, vector<8x128xf32>,
    } else {
    }
    %c0 = arith.constant 0 : index
    %c0_1 = arith.constant 0 : index
    %3 = vector.load %arg3[%c0, %c0_1] : memref<8x1xf32, #tpu.memory_space<vmem>>, vector<8x1xf32>
    %4 = vector.shape_cast %3 : vector<8x1xf32> to vector<8x1xf32>
    %5 = vector.broadcast %4 : vector<8x1xf32> to vector<8x128xf32>
    %c0_2 = arith.constant 0 : index
    %c0_3 = arith.constant 0 : index
    %6 = vector.load %arg4[%c0_2, %c0_3] : memref<8x128xf32, #tpu.memory_space<vmem>>, vector<8x128xf32>
    %c0_4 = arith.constant 0 : index
    %c0_5 = arith.constant 0 : index
    %7 = vector.load %arg5[%c0_4, %c0_5] : memref<8x128xf32, #tpu.memory_space<vmem>>, vector<8x128xf32>
    %c0_6 = arith.constant 0 : index
    %c0_7 = arith.constant 0 : index
    %8 = vector.load %arg2[%c0_6, %c0_7] : memref<8x256xf32, #tpu.memory_space<vmem>>, vector<8x128xf32>
    %9 = arith.subf %8, %5 : vector<8x128xf32>
    %10 = arith.addf %6, %9 : vector<8x128xf32>
    %11 = arith.mulf %9, %9 : vector<8x128xf32>
    %12 = arith.addf %7, %11 : vector<8x128xf32>
    %c0_8 = arith.constant 0 : index
    %c128 = arith.constant 128 : index
    %13 = vector.load %arg2[%c0_8, %c128] : memref<8x256xf32, #tpu.memory_space<vmem>>, vector<8x128xf32>
    %14 = arith.subf %13, %5 : vector<8x128xf32>
    %15 = arith.addf %10, %14 : vector<8x128xf32>
    %16 = arith.mulf %14, %14 : vector<8x128xf32>
    %17 = arith.addf %12, %16 : vector<8x128xf32>
    %c0_9 = arith.constant 0 : index
    %c0_10 = arith.constant 0 : index
    %18 = vector.load %arg4[%c0_9, %c0_10] : memref<8x128xf32, #tpu.memory_space<vmem>>, vector<8x128xf32>
    tpu.vector_store %arg4[%c0_9, %c0_10], %15 {strides = array<i32>} : memref<8x128xf32, #tpu.memory_space<vmem>>, vector<8x128xf32>,
    %c0_11 = arith.constant 0 : index
    %c0_12 = arith.constant 0 : index
    %19 = vector.load %arg5[%c0_11, %c0_12] : memref<8x128xf32, #tpu.memory_space<vmem>>, vector<8x128xf32>
    tpu.vector_store %arg5[%c0_11, %c0_12], %17 {strides = array<i32>} : memref<8x128xf32, #tpu.memory_space<vmem>>, vector<8x128xf32>,
    return
  }
  func.func @transform_0(%arg0: i32, %arg1: i32) -> (i32, i32) {
    %c0_i32 = arith.constant 0 : i32
    return %arg0, %arg1 : i32, i32
  }
  func.func @transform_1(%arg0: i32, %arg1: i32) -> (i32, i32) {
    %c0_i32 = arith.constant 0 : i32
    %c0_i32_0 = arith.constant 0 : i32
    return %arg0, %c0_i32 : i32, i32
  }
  func.func @transform_2(%arg0: i32, %arg1: i32) -> (i32, i32) {
    %c0_i32 = arith.constant 0 : i32
    %c0_i32_0 = arith.constant 0 : i32
    return %arg0, %c0_i32 : i32, i32
  }
  func.func @transform_3(%arg0: i32, %arg1: i32) -> (i32, i32) {
    %c0_i32 = arith.constant 0 : i32
    %c0_i32_0 = arith.constant 0 : i32
    return %arg0, %c0_i32 : i32, i32
  }
}

</mosaic_0001>

<llo_original>
// kernel: tile.6
$region0: #{tile.6}
  #allocation0 [shape = 's32[1]{0}', space=sflag, size = 0x4, scoped, tag = 'scoped memory for tile.6']
  %s0 = inlined_call_operand.vmem [shape: f32[4], index: 0, kind: input, shape index: {}]
  %s1 = inlined_call_operand.vmem [shape: f32[2,4], index: 1, kind: output, shape index: {}]
  // Predicated region
  $region2: #{tile.6} parent=0 // pred_check
    _
  $region3: #{tile.6} parent=0 // pred_check_branch
    %3 = sbr.rel (0) target = $region5
  $region4: #{tile.6} parent=0 // pred_region
    _
  $region5: #{tile.6} parent=0 // pred_fallthru
    _
  %v4 = vld [vmem:[%s0] ss:$0 sm:$0xff]
  %5 = vst [vmem:[%s1] sm:$0x3] %v4

// kernel: tile.0
$region0: #{tile.0}
  %s0 = inlined_call_operand.vmem [shape: f32[2,4], index: 0, kind: input, shape index: {}]
  %s1 = inlined_call_operand.vmem [shape: f32[8,1], index: 1, kind: output, shape index: {}]
  $region1: #{tile.0} parent=0
    #allocation0 [shape = 'u8[4096]{0}', space=vmem, size = 0x1000, scoped, tag = 'scoped mem for input reshape']
    %s3 = sshllo.u32 0, 2
    %v4 = vld [vmem:[%s0] sm:%s3]
    %5 = vst [vmem:[#allocation0] sm:%s3] %v4
    %v6 = vld [vmem:[#allocation0] sm:$0x3]
    %vm7 = vcmask 7168
    %8 = vst.msk [vmem:[%s1] ss:$4 sm:$0x3] %vm7, %v6
    %v9 = vld [vmem:[#allocation0] sm:$0x3]
    %10 = vrot.lane.b32.xlu0 %v9, 127
    %v11 = vpop.permute.xlu0 %10
    %vm12 = vcmask 7168
    %s13 = scalar_lea.vmem %s1, 1
    %14 = vst.msk [vmem:[%s13] ss:$4 sm:$0x3] %vm12, %v11
    %v15 = vld [vmem:[#allocation0] sm:$0x3]
    %16 = vrot.lane.b32.xlu0 %v15, 126
    %v17 = vpop.permute.xlu0 %16
    %vm18 = vcmask 7168
    %s19 = scalar_lea.vmem %s1, 2
    %20 = vst.msk [vmem:[%s19] ss:$4 sm:$0x3] %vm18, %v17
    %v21 = vld [vmem:[#allocation0] sm:$0x3]
    %22 = vrot.lane.b32.xlu0 %v21, 125
    %v23 = vpop.permute.xlu0 %22
    %vm24 = vcmask 7168
    %s25 = scalar_lea.vmem %s1, 3
    %26 = vst.msk [vmem:[%s25] ss:$4 sm:$0x3] %vm24, %v23

// kernel: pure_actnorm_initialize.1
$region0: #{pure_actnorm_initialize.1}
  #allocation0 [shape = 'u32[]', space=smem, size = 0x4, offset = 0x4, fixed_abs, tag = 'smem constant byte address 0x4 - core index']
  #allocation1 [shape = 'u32[144,128]{1,0:T(1,128)}', space=vmem, size = 0x12000, scoped, tag = 'internal scratch']
  %s0 = inlined_call_operand.vmem [shape: f32[8,256], index: 0, kind: input, shape index: {}]
  %s1 = inlined_call_operand.vmem [shape: f32[8,1], index: 1, kind: input, shape index: {}]
  %s2 = inlined_call_operand.vmem [shape: f32[8,128], index: 2, kind: output, shape index: {0}]
  %s3 = inlined_call_operand.vmem [shape: f32[8,128], index: 3, kind: output, shape index: {1}]
  %4 = xla_tuple %s2, %s3
  %s5 = sld [smem:[#allocation0]]
  $region30: #{pure_actnorm_initialize.1} parent=0
    _
  %s7 = ssub.s32 1, %s5
  %s8 = scalar_select 0, %s7, %s5
  // Predicated region
  $region2: #{pure_actnorm_initialize.1} parent=0 // pred_check
    _
  $region3: #{pure_actnorm_initialize.1} parent=0 // pred_check_branch
    %10 = sbr.rel (0) target = $region5
  $region4: #{pure_actnorm_initialize.1} parent=0 // pred_region
    _
  $region5: #{pure_actnorm_initialize.1} parent=0 // pred_fallthru
    _
  // Predicated region
  $region6: #{pure_actnorm_initialize.1} parent=0 // pred_check
    _
  $region7: #{pure_actnorm_initialize.1} parent=0 // pred_check_branch
    %12 = sbr.rel (0) target = $region9
  $region8: #{pure_actnorm_initialize.1} parent=0 // pred_region
    _
  $region9: #{pure_actnorm_initialize.1} parent=0 // pred_fallthru
    _
  %p13 = scmp.eq.s32.totalorder 0, 0
  // Predicated region
  $region10: #{pure_actnorm_initialize.1} parent=0 // pred_check
    %p14 = pneg %p13
  $region11: #{pure_actnorm_initialize.1} parent=0 // pred_check_branch
    %16 = sbr.rel (%p14) target = $region13
  $region12: #{pure_actnorm_initialize.1} parent=0 // pred_region
    %17 = vst [vmem:[%s2] sm:$0xff] 0.0
    %18 = vst [vmem:[%s3] sm:$0xff] 0.0
  $region13: #{pure_actnorm_initialize.1} parent=0 // pred_fallthru
    _
  %v19 = vld [vmem:[%s1] sm:$0xff]
  %21 = vset.pattern.permute.xlu0 0
  %22 = vperm.xlu0 %21, %v19
  %v23 = vpop.permute.xlu0 %22
  %v25 = vld [vmem:[%s2] sm:$0xff]
  %v26 = vld [vmem:[%s3] sm:$0xff]
  %v27 = vld [vmem:[%s0] sm:$0xff]
  %v28 = vsub.f32 %v27, %v23
  %v29 = vadd.f32 %v25, %v28
  %v30 = vmul.f32 %v28, %v28
  %v31 = vadd.f32 %v26, %v30
  %v32 = vld [vmem:[%s0 + $0x8] sm:$0xff]
  %v33 = vsub.f32 %v32, %v23
  %v34 = vadd.f32 %v29, %v33
  %v35 = vmul.f32 %v33, %v33
  %v36 = vadd.f32 %v31, %v35
  %37 = vst [vmem:[%s2] sm:$0xff] %v34
  %38 = vst [vmem:[%s3] sm:$0xff] %v36
  // Predicated region
  $region14: #{pure_actnorm_initialize.1} parent=0 // pred_check
    _
  $region15: #{pure_actnorm_initialize.1} parent=0 // pred_check_branch
    %40 = sbr.rel (0) target = $region17
  $region16: #{pure_actnorm_initialize.1} parent=0 // pred_region
    _
  $region17: #{pure_actnorm_initialize.1} parent=0 // pred_fallthru
    _
  // Predicated region
  $region18: #{pure_actnorm_initialize.1} parent=0 // pred_check
    _
  $region19: #{pure_actnorm_initialize.1} parent=0 // pred_check_branch
    %42 = sbr.rel (0) target = $region21
  $region20: #{pure_actnorm_initialize.1} parent=0 // pred_region
    _
  $region21: #{pure_actnorm_initialize.1} parent=0 // pred_fallthru
    _
  // Predicated region
  $region22: #{pure_actnorm_initialize.1} parent=0 // pred_check
    _
  $region23: #{pure_actnorm_initialize.1} parent=0 // pred_check_branch
    %44 = sbr.rel (0) target = $region25
  $region24: #{pure_actnorm_initialize.1} parent=0 // pred_region
    _
  $region25: #{pure_actnorm_initialize.1} parent=0 // pred_fallthru
    _
  // Predicated region
  $region26: #{pure_actnorm_initialize.1} parent=0 // pred_check
    _
  $region27: #{pure_actnorm_initialize.1} parent=0 // pred_check_branch
    %46 = sbr.rel (0) target = $region29
  $region28: #{pure_actnorm_initialize.1} parent=0 // pred_region
    _
  $region29: #{pure_actnorm_initialize.1} parent=0 // pred_fallthru
    _

</llo_original>
